<compile_context>
chip_gen: v6e
topology: v6e:2x2x1
jax: 0.10.0
libtpu: 0.0.40
codegen_flags: <defaults>
</compile_context>

<pallas_src>
import functools

import jax
import jax.numpy as jnp
from jax.experimental import pallas as pl
from jax.experimental.pallas import tpu as pltpu


def _round_up(n, m):
    return ((n + m - 1) // m) * m


def _pad2(a, rows, cols):
    pr, pc = rows - a.shape[0], cols - a.shape[1]
    if pr == 0 and pc == 0:
        return a
    return jnp.pad(a, ((0, pr), (0, pc)))


def _sigmoid(z):
    # sigmoid(z) == 0.5 * tanh(0.5 * z) + 0.5 : one EUP push per element
    # instead of exp + true divide.
    return 0.5 * jnp.tanh(0.5 * z) + 0.5


def autoencoder_kernel(x_ref, wg_ref, bg_ref, wh_ref, bh_ref, o_ref):
    # Cast x to the matmul dtype (bf16 when enabled) in-kernel: no separate
    # XLA cast pass / extra HBM round trip on the x stream.
    x = x_ref[...].astype(wg_ref.dtype)
    # Layer g: (tb, Qp) @ (Qp, Kp) with f32 MXU accumulation; bias+sigmoid f32.
    hidden = jnp.dot(x, wg_ref[...], preferred_element_type=jnp.float32)
    hidden = _sigmoid(hidden + bg_ref[...])
    # Layer h: (tb, Kp) @ (Kp, Qp); hidden cast back to the weight dtype.
    out = jnp.dot(hidden.astype(wh_ref.dtype), wh_ref[...],
                  preferred_element_type=jnp.float32)
    o_ref[...] = _sigmoid(out + bh_ref[...]).astype(o_ref.dtype)


def prepare_params(g_weight, g_bias, h_weight, h_bias, *, use_bf16=True):
    """One-time parameter prep (kept OUT of the per-call hot path): transpose,
    pad feature dims up to multiples of 128 (lane-dense), cast matmul operands
    to bf16.  Zero padding is exact: padded hidden units see weight 0 / bias 0
    (sigmoid -> 0.5) and then multiply all-zero rows of wh, contributing
    nothing to the real outputs."""
    K, Q = g_weight.shape
    assert h_weight.shape == (Q, K)
    Qp, Kp = _round_up(Q, 128), _round_up(K, 128)
    mm_dtype = jnp.bfloat16 if use_bf16 else jnp.float32

    wg = _pad2(jnp.asarray(g_weight, jnp.float32).T, Qp, Kp).astype(mm_dtype)  # (Qp, Kp)
    wh = _pad2(jnp.asarray(h_weight, jnp.float32).T, Kp, Qp).astype(mm_dtype)  # (Kp, Qp)
    bg = _pad2(jnp.asarray(g_bias, jnp.float32).reshape(1, K), 1, Kp)          # (1, Kp) f32
    bh = _pad2(jnp.asarray(h_bias, jnp.float32).reshape(1, Q), 1, Qp)          # (1, Qp) f32
    return wg, bg, wh, bh


def _pick_tb(B):
    # Largest batch tile that still leaves >= 4 grid steps, i.e. >= 2 steps
    # per v7x TensorCore so each core's pipeline overlaps DMA with compute.
    for tb in (512, 256, 128):
        if B >= 4 * tb:
            return tb
    return min(128, _round_up(B, 8))


def _vmem_limit_bytes(tb, Qp, Kp, x_dtype, out_dtype, w_dtype):
    # Real footprint: double-buffered streamed tiles (x, out), single-buffered
    # resident weights/biases, plus f32 intermediates; 2x margin for compiler
    # scratch, floored at the 16 MiB scoped default and capped at 48 MiB so we
    # never claim all of v7x's 64 MiB physical VMEM.
    bpe = lambda d: jnp.dtype(d).itemsize
    need = (2 * tb * Qp * bpe(x_dtype)        # x tiles (double-buffered)
            + 2 * tb * Qp * bpe(out_dtype)    # out tiles (double-buffered)
            + 2 * Qp * Kp * bpe(w_dtype)      # wg + wh (single-buffered)
            + (Kp + Qp) * 4                   # biases (f32)
            + 4 * tb * Qp * 4)                # f32 hidden/out intermediates
    return int(min(48 * 1024 * 1024,
                   max(16 * 1024 * 1024, _round_up(2 * need, 1 << 20))))


@functools.partial(jax.jit, static_argnames=("tb", "out_dtype"))
def autoencoder_forward(x, wg, bg, wh, bh, *, tb=None, out_dtype=None):
    """x: (B, Q) user vectors (any float dtype; cast happens in-kernel).
    (wg, bg, wh, bh) come from prepare_params()."""
    B, Q = x.shape
    Qp, Kp = wg.shape
    assert wh.shape == (Kp, Qp) and bg.shape == (1, Kp) and bh.shape == (1, Qp)

    if out_dtype is None:
        out_dtype = x.dtype
    if tb is None:
        tb = _pick_tb(B)
    tb = min(tb, _round_up(B, 8))
    Bp = _round_up(B, tb)

    needs_pad = (Bp != B) or (Qp != Q)
    xp = _pad2(x, Bp, Qp) if needs_pad else x   # elided when already aligned

    resident = pl.Buffered(1)   # constant index_map -> one buffer is enough
    grid = (Bp // tb,)
    out = pl.pallas_call(
        autoencoder_kernel,
        out_shape=jax.ShapeDtypeStruct((Bp, Qp), out_dtype),
        grid_spec=pltpu.PrefetchScalarGridSpec(
            num_scalar_prefetch=0,
            grid=grid,
            in_specs=[
                pl.BlockSpec((tb, Qp), lambda i: (i, 0)),                        # x: streamed
                pl.BlockSpec((Qp, Kp), lambda i: (0, 0), pipeline_mode=resident),  # wg
                pl.BlockSpec((1, Kp), lambda i: (0, 0), pipeline_mode=resident),   # bg (f32)
                pl.BlockSpec((Kp, Qp), lambda i: (0, 0), pipeline_mode=resident),  # wh
                pl.BlockSpec((1, Qp), lambda i: (0, 0), pipeline_mode=resident),   # bh (f32)
            ],
            out_specs=pl.BlockSpec((tb, Qp), lambda i: (i, 0)),
        ),
        compiler_params=pltpu.CompilerParams(
            dimension_semantics=("parallel",),   # batch steps shard across v7x's 2 TCs
            vmem_limit_bytes=_vmem_limit_bytes(tb, Qp, Kp, x.dtype, out_dtype, wg.dtype),
        ),
    )(xp, wg, bg, wh, bh)

    if needs_pad:
        out = out[:B, :Q]
    return out


def reference_forward(x, g_weight, g_bias, h_weight, h_bias):
    out = jax.nn.sigmoid(x @ g_weight.T + g_bias)
    out = jax.nn.sigmoid(out @ h_weight.T + h_bias)
    return out


def _init(key, B, Q, K):
    kx, kgw, kgb, khw, khb = jax.random.split(key, 5)
    g_bound = 1.0 / jnp.sqrt(Q)   # nn.Linear default: U(-1/sqrt(fan_in), 1/sqrt(fan_in))
    h_bound = 1.0 / jnp.sqrt(K)
    g_weight = jax.random.uniform(kgw, (K, Q), jnp.float32, -g_bound, g_bound)
    g_bias = jax.random.uniform(kgb, (K,), jnp.float32, -g_bound, g_bound)
    h_weight = jax.random.uniform(khw, (Q, K), jnp.float32, -h_bound, h_bound)
    h_bias = jax.random.uniform(khb, (Q,), jnp.float32, -h_bound, h_bound)
    x = jax.random.uniform(kx, (B, Q), jnp.float32)   # user vectors in [0, 1)
    return x, g_weight, g_bias, h_weight, h_bias


if __name__ == "__main__":
    key = jax.random.PRNGKey(0)

    # num_question=256, k=128; B=512 -> tb=128 -> 4-step parallel grid
    # (>= 2 steps per v7x TensorCore, pipelined on all generations).
    B, Q, K = 512, 256, 128
    x, gw, g_b, hw, h_b = _init(key, B, Q, K)
    ref = reference_forward(x, gw, g_b, hw, h_b)

    # f32 MXU path — tight tolerance vs the reference.
    out_f32 = autoencoder_forward(x, *prepare_params(gw, g_b, hw, h_b, use_bf16=False))
    out_f32 = jax.block_until_ready(out_f32)
    assert out_f32.shape == (B, Q) and out_f32.dtype == jnp.float32
    assert jnp.allclose(out_f32, ref, atol=1e-5, rtol=1e-5)

    # bf16-operand MXU path (f32 accumulation) with bf16 output writeback.
    out_bf16 = autoencoder_forward(
        x, *prepare_params(gw, g_b, hw, h_b, use_bf16=True), out_dtype=jnp.bfloat16)
    out_bf16 = jax.block_until_ready(out_bf16)
    assert out_bf16.shape == (B, Q) and out_bf16.dtype == jnp.bfloat16
    assert jnp.allclose(out_bf16.astype(jnp.float32), ref, atol=2e-2)

    # Module-default k=100 (< 128): exercises the weight lane-padding path.
    B2, Q2, K2 = 512, 256, 100
    x2, gw2, gb2, hw2, hb2 = _init(jax.random.PRNGKey(0), B2, Q2, K2)
    out_pad = autoencoder_forward(x2, *prepare_params(gw2, gb2, hw2, hb2, use_bf16=True))
    out_pad = jax.block_until_ready(out_pad)
    ref2 = reference_forward(x2, gw2, gb2, hw2, hb2)
    assert out_pad.shape == (B2, Q2)
    assert jnp.allclose(out_pad, ref2, atol=2e-2)

    print("KERNEL_OK")
</pallas_src>

<mosaic_0001>
module attributes {stable_mosaic.version = 11 : i64} {
  func.func @autoencoder_kernel(%arg0: i32, %arg1: memref<128x256xf32, #tpu.memory_space<vmem>>, %arg2: memref<256x128xf32, #tpu.memory_space<vmem>>, %arg3: memref<1x128xf32, #tpu.memory_space<vmem>>, %arg4: memref<128x256xf32, #tpu.memory_space<vmem>>, %arg5: memref<1x256xf32, #tpu.memory_space<vmem>>, %arg6: memref<128x256xf32, #tpu.memory_space<vmem>>) attributes {dimension_semantics = [#tpu.dimension_semantics<parallel>], iteration_bounds = array<i64: 4>, scalar_prefetch = 0 : i64, scratch_operands = 0 : i64, tpu.core_type = #tpu.core_type<tc>, window_params = [{transform_indices = @transform_0, window_bounds = array<i64: 128, 256>}, {pipeline_mode = #tpu.pipeline_mode<synchronous>, transform_indices = @transform_1, window_bounds = array<i64: 256, 128>}, {pipeline_mode = #tpu.pipeline_mode<synchronous>, transform_indices = @transform_2, window_bounds = array<i64: 1, 128>}, {pipeline_mode = #tpu.pipeline_mode<synchronous>, transform_indices = @transform_3, window_bounds = array<i64: 128, 256>}, {pipeline_mode = #tpu.pipeline_mode<synchronous>, transform_indices = @transform_4, window_bounds = array<i64: 1, 256>}, {transform_indices = @transform_5, window_bounds = array<i64: 128, 256>}]} {
    %c0 = arith.constant 0 : index
    %c0_0 = arith.constant 0 : index
    %0 = vector.load %arg1[%c0, %c0_0] : memref<128x256xf32, #tpu.memory_space<vmem>>, vector<128x256xf32>
    %c0_1 = arith.constant 0 : index
    %c0_2 = arith.constant 0 : index
    %1 = vector.load %arg2[%c0_1, %c0_2] : memref<256x128xf32, #tpu.memory_space<vmem>>, vector<256x128xf32>
    %cst = arith.constant dense<0.000000e+00> : vector<128x128xf32>
    %2 = tpu.matmul %0, %1, %cst {dimension_numbers = #tpu.dot_dimension_numbers<[1], [0], [0], [1], [0, 0, 1, 1], [], []>} : vector<128x256xf32>, vector<256x128xf32>, vector<128x128xf32> -> vector<128x128xf32>
    %c0_3 = arith.constant 0 : index
    %c0_4 = arith.constant 0 : index
    %3 = vector.load %arg3[%c0_3, %c0_4] : memref<1x128xf32, #tpu.memory_space<vmem>>, vector<1x128xf32>
    %4 = vector.broadcast %3 : vector<1x128xf32> to vector<128x128xf32>
    %5 = arith.addf %2, %4 : vector<128x128xf32>
    %cst_5 = arith.constant 5.000000e-01 : f32
    %6 = vector.broadcast %cst_5 : f32 to vector<128x128xf32>
    %7 = arith.mulf %6, %5 : vector<128x128xf32>
    %8 = math.tanh %7 : vector<128x128xf32>
    %cst_6 = arith.constant 5.000000e-01 : f32
    %9 = vector.broadcast %cst_6 : f32 to vector<128x128xf32>
    %10 = arith.mulf %9, %8 : vector<128x128xf32>
    %cst_7 = arith.constant 5.000000e-01 : f32
    %11 = vector.broadcast %cst_7 : f32 to vector<128x128xf32>
    %12 = arith.addf %10, %11 : vector<128x128xf32>
    %c0_8 = arith.constant 0 : index
    %c0_9 = arith.constant 0 : index
    %13 = vector.load %arg4[%c0_8, %c0_9] : memref<128x256xf32, #tpu.memory_space<vmem>>, vector<128x256xf32>
    %cst_10 = arith.constant dense<0.000000e+00> : vector<128x256xf32>
    %14 = tpu.matmul %12, %13, %cst_10 {dimension_numbers = #tpu.dot_dimension_numbers<[1], [0], [0], [1], [0, 0, 1, 1], [], []>} : vector<128x128xf32>, vector<128x256xf32>, vector<128x256xf32> -> vector<128x256xf32>
    %c0_11 = arith.constant 0 : index
    %c0_12 = arith.constant 0 : index
    %15 = vector.load %arg5[%c0_11, %c0_12] : memref<1x256xf32, #tpu.memory_space<vmem>>, vector<1x256xf32>
    %16 = vector.broadcast %15 : vector<1x256xf32> to vector<128x256xf32>
    %17 = arith.addf %14, %16 : vector<128x256xf32>
    %cst_13 = arith.constant 5.000000e-01 : f32
    %18 = vector.broadcast %cst_13 : f32 to vector<128x256xf32>
    %19 = arith.mulf %18, %17 : vector<128x256xf32>
    %20 = math.tanh %19 : vector<128x256xf32>
    %cst_14 = arith.constant 5.000000e-01 : f32
    %21 = vector.broadcast %cst_14 : f32 to vector<128x256xf32>
    %22 = arith.mulf %21, %20 : vector<128x256xf32>
    %cst_15 = arith.constant 5.000000e-01 : f32
    %23 = vector.broadcast %cst_15 : f32 to vector<128x256xf32>
    %24 = arith.addf %22, %23 : vector<128x256xf32>
    %c0_16 = arith.constant 0 : index
    %c0_17 = arith.constant 0 : index
    %25 = vector.load %arg6[%c0_16, %c0_17] : memref<128x256xf32, #tpu.memory_space<vmem>>, vector<128x256xf32>
    tpu.vector_store %arg6[%c0_16, %c0_17], %24 {strides = array<i32>} : memref<128x256xf32, #tpu.memory_space<vmem>>, vector<128x256xf32>,
    return
  }
  func.func @transform_0(%arg0: i32) -> (i32, i32) {
    %c0_i32 = arith.constant 0 : i32
    %c0_i32_0 = arith.constant 0 : i32
    return %arg0, %c0_i32 : i32, i32
  }
  func.func @transform_1(%arg0: i32) -> (i32, i32) {
    %c0_i32 = arith.constant 0 : i32
    %c0_i32_0 = arith.constant 0 : i32
    %c0_i32_1 = arith.constant 0 : i32
    return %c0_i32, %c0_i32_0 : i32, i32
  }
  func.func @transform_2(%arg0: i32) -> (i32, i32) {
    %c0_i32 = arith.constant 0 : i32
    %c0_i32_0 = arith.constant 0 : i32
    %c0_i32_1 = arith.constant 0 : i32
    return %c0_i32, %c0_i32_0 : i32, i32
  }
  func.func @transform_3(%arg0: i32) -> (i32, i32) {
    %c0_i32 = arith.constant 0 : i32
    %c0_i32_0 = arith.constant 0 : i32
    %c0_i32_1 = arith.constant 0 : i32
    return %c0_i32, %c0_i32_0 : i32, i32
  }
  func.func @transform_4(%arg0: i32) -> (i32, i32) {
    %c0_i32 = arith.constant 0 : i32
    %c0_i32_0 = arith.constant 0 : i32
    %c0_i32_1 = arith.constant 0 : i32
    return %c0_i32, %c0_i32_0 : i32, i32
  }
  func.func @transform_5(%arg0: i32) -> (i32, i32) {
    %c0_i32 = arith.constant 0 : i32
    %c0_i32_0 = arith.constant 0 : i32
    return %arg0, %c0_i32 : i32, i32
  }
}

</mosaic_0001>

<llo_original>
// kernel: autoencoder_forward.1
$region0: #{autoencoder_forward.1}
  #allocation0 [shape = 'u32[]', space=smem, size = 0x4, offset = 0x4, fixed_abs, tag = 'smem constant byte address 0x4 - core index']
  #allocation1 [shape = 'u32[144,128]{1,0:T(1,128)}', space=vmem, size = 0x12000, scoped, tag = 'internal scratch']
  %s0 = inlined_call_operand.hbm [shape: f32[512,256], index: 0, kind: input, shape index: {}]
  %s1 = inlined_call_operand.hbm [shape: f32[256,128], index: 1, kind: input, shape index: {}]
  %s2 = inlined_call_operand.vmem [shape: f32[1,128], index: 2, kind: input, shape index: {}]
  %s3 = inlined_call_operand.hbm [shape: f32[128,256], index: 3, kind: input, shape index: {}]
  %s4 = inlined_call_operand.vmem [shape: f32[1,256], index: 4, kind: input, shape index: {}]
  %s5 = inlined_call_operand.hbm [shape: f32[512,256], index: 5, kind: output, shape index: {}]
  %s6 = sld [smem:[#allocation0]]
  $region65: #{autoencoder_forward.1} parent=0
    _
  %s8 = ssub.s32 1, %s6
  %s9 = scalar_select 0, %s8, %s6
  $region1: #{autoencoder_forward.1} parent=0
    #allocation2 [shape = 'u8[262144]{0}', space=vmem, size = 0x40000, scoped, tag = 'input window, operand 0']
    #allocation3 [shape = 's32[2]{0}', space=sflag, size = 0x8, scoped, tag = 'scoped memory for autoencoder_forward.1']
    #allocation4 [shape = 's32[2]{0}', space=sflag, size = 0x8, scoped, tag = 'scoped memory for autoencoder_forward.1']
    #allocation5 [shape = 'u8[131072]{0}', space=vmem, size = 0x20000, scoped, tag = 'input window, operand 1, single buffered']
    #allocation6 [shape = 's32[1]{0}', space=sflag, size = 0x4, scoped, tag = 'scoped memory for autoencoder_forward.1']
    #allocation7 [shape = 'u8[131072]{0}', space=vmem, size = 0x20000, scoped, tag = 'input window, operand 3, single buffered']
    #allocation8 [shape = 'u8[262144]{0}', space=vmem, size = 0x40000, scoped, tag = 'output window, operand 0']
    %10 = vsyncpa [#allocation3], 0
    %s11 = scalar_lea.sflag [#allocation3], 1
    %12 = vsyncpa %s11, 0
    %13 = vsyncpa [#allocation6], 0
    %14 = vsyncpa [#allocation4], 0
    %s15 = scalar_lea.sflag [#allocation4], 1
    %16 = vsyncpa %s15, 0
    loop: start=0, step=1, limit=6
    $region2: #{autoencoder_forward.1} parent=1 // loop_pre_header
      _
    $region3: #{autoencoder_forward.1} parent=1 // loop_header
      %s18 = sphi 0, %s22
      %p19 = scmp.ge.s32.totalorder %s18, 6
      %s28 = sphi 0, %s30
      %s31 = sphi 0, %s28
      %s32 = sphi 0, %s31
      %s48 = sphi 0, %s32
      %s52 = sphi 0, %s52
      %s54 = sphi 0, %s52
      %s55 = sphi 0, %s54
      %s69 = sphi 0, %s55
      %s73 = sphi 0, %s73
      %s75 = sphi 0, %s73
      %s76 = sphi 0, %s75
      %s90 = sphi 0, %s76
      %s94 = sphi 0, %s94
      %s96 = sphi 0, %s94
      %s97 = sphi 0, %s96
      %s111 = sphi 0, %s97
      %s115 = sphi 0, %s115
      %s117 = sphi 0, %s115
      %s118 = sphi 0, %s117
      %s132 = sphi 0, %s118
      %s138 = sphi 0, %s140
      %s141 = sphi 0, %s138
      %s142 = sphi 0, %s141
      %s158 = sphi 0, %s142
    $region4: #{autoencoder_forward.1} parent=1 // loop_header_branch
      %21 = sbr.rel (%p19) target = $region8
    $region5: #{autoencoder_forward.1} parent=1 // loop_body
      %s23 = ssub.s32 %s18, 1
      %s24 = ssub.s32 %s18, 2
      %s25 = sadd.s32 %s18, 1
      %s26 = ssub.s32 %s18, %s25
      %p27 = scmp.eq.s32.totalorder %s26, 0
      %s29 = sadd.s32 %s28, 1
      %s30 = scalar_select %p27, %s28, %s29
      %p33 = pneg %p27
      %p34 = scmp.eq.s32.totalorder %s18, 3
      %p35 = por %p33, %p34
      %p36 = scmp.ne.s32.totalorder %s28, %s31
      %p37 = scmp.eq.s32.totalorder %s18, 0
      %p38 = por %p36, %p37
      %p39 = scmp.ne.s32.totalorder %s28, %s31
      %p40 = scmp.eq.s32.totalorder %s23, 3
      %p41 = por %p39, %p40
      %p42 = scmp.ne.s32.totalorder %s31, %s32
      %p43 = scmp.eq.s32.totalorder %s23, 0
      %p44 = por %p42, %p43
      %p45 = scmp.ne.s32.totalorder %s31, %s32
      %p46 = scmp.eq.s32.totalorder %s24, 3
      %p47 = por %p45, %p46
      %p49 = scmp.ne.s32.totalorder %s32, %s48
      %p50 = scmp.eq.s32.totalorder %s24, 0
      %p51 = por %p49, %p50
      %s53 = sadd.s32 %s52, 1
      %p56 = scmp.eq.s32.totalorder %s18, 3
      %p57 = scmp.ne.s32.totalorder %s52, %s54
      %p58 = scmp.eq.s32.totalorder %s18, 0
      %p59 = por %p57, %p58
      %p60 = scmp.ne.s32.totalorder %s52, %s54
      %p61 = scmp.eq.s32.totalorder %s23, 3
      %p62 = por %p60, %p61
      %p63 = scmp.ne.s32.totalorder %s54, %s55
      %p64 = scmp.eq.s32.totalorder %s23, 0
      %p65 = por %p63, %p64
      %p66 = scmp.ne.s32.totalorder %s54, %s55
      %p67 = scmp.eq.s32.totalorder %s24, 3
      %p68 = por %p66, %p67
      %p70 = scmp.ne.s32.totalorder %s55, %s69
      %p71 = scmp.eq.s32.totalorder %s24, 0
      %p72 = por %p70, %p71
      %s74 = sadd.s32 %s73, 1
      %p77 = scmp.eq.s32.totalorder %s18, 3
      %p78 = scmp.ne.s32.totalorder %s73, %s75
      %p79 = scmp.eq.s32.totalorder %s18, 0
      %p80 = por %p78, %p79
      %p81 = scmp.ne.s32.totalorder %s73, %s75
      %p82 = scmp.eq.s32.totalorder %s23, 3
      %p83 = por %p81, %p82
      %p84 = scmp.ne.s32.totalorder %s75, %s76
      %p85 = scmp.eq.s32.totalorder %s23, 0
      %p86 = por %p84, %p85
      %p87 = scmp.ne.s32.totalorder %s75, %s76
      %p88 = scmp.eq.s32.totalorder %s24, 3
      %p89 = por %p87, %p88
      %p91 = scmp.ne.s32.totalorder %s76, %s90
      %p92 = scmp.eq.s32.totalorder %s24, 0
      %p93 = por %p91, %p92
      %s95 = sadd.s32 %s94, 1
      %p98 = scmp.eq.s32.totalorder %s18, 3
      %p99 = scmp.ne.s32.totalorder %s94, %s96
      %p100 = scmp.eq.s32.totalorder %s18, 0
      %p101 = por %p99, %p100
      %p102 = scmp.ne.s32.totalorder %s94, %s96
      %p103 = scmp.eq.s32.totalorder %s23, 3
      %p104 = por %p102, %p103
      %p105 = scmp.ne.s32.totalorder %s96, %s97
      %p106 = scmp.eq.s32.totalorder %s23, 0
      %p107 = por %p105, %p106
      %p108 = scmp.ne.s32.totalorder %s96, %s97
      %p109 = scmp.eq.s32.totalorder %s24, 3
      %p110 = por %p108, %p109
      %p112 = scmp.ne.s32.totalorder %s97, %s111
      %p113 = scmp.eq.s32.totalorder %s24, 0
      %p114 = por %p112, %p113
      %s116 = sadd.s32 %s115, 1
      %p119 = scmp.eq.s32.totalorder %s18, 3
      %p120 = scmp.ne.s32.totalorder %s115, %s117
      %p121 = scmp.eq.s32.totalorder %s18, 0
      %p122 = por %p120, %p121
      %p123 = scmp.ne.s32.totalorder %s115, %s117
      %p124 = scmp.eq.s32.totalorder %s23, 3
      %p125 = por %p123, %p124
      %p126 = scmp.ne.s32.totalorder %s117, %s118
      %p127 = scmp.eq.s32.totalorder %s23, 0
      %p128 = por %p126, %p127
      %p129 = scmp.ne.s32.totalorder %s117, %s118
      %p130 = scmp.eq.s32.totalorder %s24, 3
      %p131 = por %p129, %p130
      %p133 = scmp.ne.s32.totalorder %s118, %s132
      %p134 = scmp.eq.s32.totalorder %s24, 0
      %p135 = por %p133, %p134
      %s136 = ssub.s32 %s18, %s25
      %p137 = scmp.eq.s32.totalorder %s136, 0
      %s139 = sadd.s32 %s138, 1
      %s140 = scalar_select %p137, %s138, %s139
      %p143 = pneg %p137
      %p144 = scmp.eq.s32.totalorder %s18, 3
      %p145 = por %p143, %p144
      %p146 = scmp.ne.s32.totalorder %s138, %s141
      %p147 = scmp.eq.s32.totalorder %s18, 0
      %p148 = por %p146, %p147
      %p149 = scmp.ne.s32.totalorder %s138, %s141
      %p150 = scmp.eq.s32.totalorder %s23, 3
      %p151 = por %p149, %p150
      %p152 = scmp.ne.s32.totalorder %s141, %s142
      %p153 = scmp.eq.s32.totalorder %s23, 0
      %p154 = por %p152, %p153
      %p155 = scmp.ne.s32.totalorder %s141, %s142
      %p156 = scmp.eq.s32.totalorder %s24, 3
      %p157 = por %p155, %p156
      %p159 = scmp.ne.s32.totalorder %s142, %s158
      %p160 = scmp.eq.s32.totalorder %s24, 0
      %p161 = por %p159, %p160
      %p162 = scmp.le.s32.totalorder 1, %s18
      %p163 = scmp.lt.s32.totalorder %s18, 5
      %p164 = pnand %p162, %p163
      %p165 = pneg %p164
      // Predicated region
      $region9: #{autoencoder_forward.1} parent=5 // pred_check
        _
      $region10: #{autoencoder_forward.1} parent=5 // pred_check_branch
        %167 = sbr.rel (%p164) target = $region12
      $region11: #{autoencoder_forward.1} parent=5 // pred_region
        %s168 = ssub.s32 %s18, 1
        // Predicated region
        $region13: #{autoencoder_forward.1} parent=11 // pred_check
          %p169 = pneg %p65
        $region14: #{autoencoder_forward.1} parent=11 // pred_check_branch
          %171 = sbr.rel (%p169) target = $region16
        $region15: #{autoencoder_forward.1} parent=11 // pred_region
          %s173 = ssub.s32 4096, 4096
          %174 = vsyncadd [#allocation6], %s173
          %s175 = sshll.u32 [#allocation5], 4
          %s176 = int_to_ptr.vmem [resolvable:$true] %s175
          %181 = dma.hbm_to_vmem [thread:$0]  %s1, 4096, %s176, [#allocation6], 128, 128, 8
        $region16: #{autoencoder_forward.1} parent=11 // pred_fallthru
          _
        // Predicated region
        $region17: #{autoencoder_forward.1} parent=11 // pred_check
          %p182 = pneg %p86
        $region18: #{autoencoder_forward.1} parent=11 // pred_check_branch
          %184 = sbr.rel (%p182) target = $region20
        $region19: #{autoencoder_forward.1} parent=11 // pred_region
          _
        $region20: #{autoencoder_forward.1} parent=11 // pred_fallthru
          _
        // Predicated region
        $region21: #{autoencoder_forward.1} parent=11 // pred_check
          %p185 = pneg %p107
        $region22: #{autoencoder_forward.1} parent=11 // pred_check_branch
          %187 = sbr.rel (%p185) target = $region24
        $region23: #{autoencoder_forward.1} parent=11 // pred_region
          %s189 = ssub.s32 4096, 4096
          %190 = vsyncadd [#allocation6], %s189
          %s191 = sshll.u32 [#allocation7], 4
          %s192 = int_to_ptr.vmem [resolvable:$true] %s191
          %197 = dma.hbm_to_vmem [thread:$0]  %s3, 4096, %s192, [#allocation6], 256, 256, 16
        $region24: #{autoencoder_forward.1} parent=11 // pred_fallthru
          _
        // Predicated region
        $region25: #{autoencoder_forward.1} parent=11 // pred_check
          %p198 = pneg %p128
        $region26: #{autoencoder_forward.1} parent=11 // pred_check_branch
          %200 = sbr.rel (%p198) target = $region28
        $region27: #{autoencoder_forward.1} parent=11 // pred_region
          _
        $region28: #{autoencoder_forward.1} parent=11 // pred_fallthru
          _
      $region12: #{autoencoder_forward.1} parent=5 // pred_fallthru
        _
      %p201 = scmp.lt.s32.totalorder %s18, 4
      // Predicated region
      $region29: #{autoencoder_forward.1} parent=5 // pred_check
        %p202 = pneg %p201
      $region30: #{autoencoder_forward.1} parent=5 // pred_check_branch
        %204 = sbr.rel (%p202) target = $region32
      $region31: #{autoencoder_forward.1} parent=5 // pred_region
        // Predicated region
        $region33: #{autoencoder_forward.1} parent=31 // pred_check
          %p205 = pneg %p38
        $region34: #{autoencoder_forward.1} parent=31 // pred_check_branch
          %207 = sbr.rel (%p205) target = $region36
        $region35: #{autoencoder_forward.1} parent=31 // pred_region
          %s208 = sand.u32 %s28, 1
          %s209 = scalar_lea.sflag [#allocation3], %s208
          %s210 = sand.u32 %s28, 1
          %s211 = smul.addr %s210, 256
          %s212 = scalar_lea.vmem [#allocation2], %s211
          %s213 = smul.u32 16, %s18
          %s215 = ssub.s32 4096, 4096
          %216 = vsyncadd %s209, %s215
          %s217 = smul.addr %s213, 2
          %s218 = smul.addr %s217, 128
          %s219 = scalar_lea.hbm %s0, %s218
          %s220 = sshll.u32 %s212, 4
          %s221 = int_to_ptr.vmem [resolvable:$true] %s220
          %226 = dma.hbm_to_vmem [thread:$0]  %s219, 4096, %s221, %s209, 256, 256, 16
        $region36: #{autoencoder_forward.1} parent=31 // pred_fallthru
          _
      $region32: #{autoencoder_forward.1} parent=5 // pred_fallthru
        _
      %p227 = scmp.le.s32.totalorder 1, %s18
      %p228 = scmp.lt.s32.totalorder %s18, 5
      %p229 = pnand %p227, %p228
      %p230 = pneg %p229
      // Predicated region
      $region37: #{autoencoder_forward.1} parent=5 // pred_check
        _
      $region38: #{autoencoder_forward.1} parent=5 // pred_check_branch
        %232 = sbr.rel (%p229) target = $region40
      $region39: #{autoencoder_forward.1} parent=5 // pred_region
        %s233 = ssub.s32 %s18, 1
        %s234 = sand.u32 %s31, 1
        %s235 = scalar_lea.sflag [#allocation3], %s234
        %s236 = sand.u32 %s31, 1
        %s237 = smul.addr %s236, 256
        %s238 = scalar_lea.vmem [#allocation2], %s237
        // Predicated region
        $region41: #{autoencoder_forward.1} parent=39 // pred_check
          %p239 = pneg %p44
        $region42: #{autoencoder_forward.1} parent=39 // pred_check_branch
          %241 = sbr.rel (%p239) target = $region44
        $region43: #{autoencoder_forward.1} parent=39 // pred_region
          %242 = dma.done %s235, 4096
        $region44: #{autoencoder_forward.1} parent=39 // pred_fallthru
          _
        // Predicated region
        $region45: #{autoencoder_forward.1} parent=39 // pred_check
          %p243 = pneg %p65
        $region46: #{autoencoder_forward.1} parent=39 // pred_check_branch
          %245 = sbr.rel (%p243) target = $region48
        $region47: #{autoencoder_forward.1} parent=39 // pred_region
          %246 = dma.done [#allocation6], 4096
        $region48: #{autoencoder_forward.1} parent=39 // pred_fallthru
          _
        // Predicated region
        $region49: #{autoencoder_forward.1} parent=39 // pred_check
          %p247 = pneg %p107
        $region50: #{autoencoder_forward.1} parent=39 // pred_check_branch
          %249 = sbr.rel (%p247) target = $region52
        $region51: #{autoencoder_forward.1} parent=39 // pred_region
          %250 = dma.done [#allocation6], 4096
        $region52: #{autoencoder_forward.1} parent=39 // pred_fallthru
          _
        %s251 = sand.u32 %s31, 1
        %s252 = scalar_lea.sflag [#allocation3], %s251
        %s253 = sand.u32 %s31, 1
        %s254 = smul.addr %s253, 256
        %s255 = scalar_lea.vmem [#allocation2], %s254
        %p256 = pneg %p44
        %p257 = pneg %p41
        %p258 = pneg %p65
        %p259 = pneg %p62
        %p260 = pneg %p86
        %p261 = pneg %p83
        %p262 = pneg %p107
        %p263 = pneg %p104
        %p264 = pneg %p128
        %p265 = pneg %p125
        %p266 = pneg %p154
        %p267 = pneg %p151
        %s268 = sand.u32 %s141, 1
        %s269 = scalar_lea.sflag [#allocation4], %s268
        %s270 = sand.u32 %s141, 1
        %s271 = smul.addr %s270, 256
        %s272 = scalar_lea.vmem [#allocation8], %s271
        %s273 = smul.u32 16, %s23
        %s274 = smul.u32 16, %s23
        %v275 = vld [vmem:[%s238] sm:$0xff]
        %v276 = vld [vmem:[%s238 + $0x8] sm:$0xff]
        %v277 = vld [vmem:[%s238 + $0x10] sm:$0xff]
        %v278 = vld [vmem:[%s238 + $0x18] sm:$0xff]
        %v279 = vld [vmem:[%s238 + $0x20] sm:$0xff]
        %v280 = vld [vmem:[%s238 + $0x28] sm:$0xff]
        %v281 = vld [vmem:[%s238 + $0x30] sm:$0xff]
        %v282 = vld [vmem:[%s238 + $0x38] sm:$0xff]
        %v283 = vld [vmem:[%s238 + $0x40] sm:$0xff]
        %v284 = vld [vmem:[%s238 + $0x48] sm:$0xff]
        %v285 = vld [vmem:[%s238 + $0x50] sm:$0xff]
        %v286 = vld [vmem:[%s238 + $0x58] sm:$0xff]
        %v287 = vld [vmem:[%s238 + $0x60] sm:$0xff]
        %v288 = vld [vmem:[%s238 + $0x68] sm:$0xff]
        %v289 = vld [vmem:[%s238 + $0x70] sm:$0xff]
        %v290 = vld [vmem:[%s238 + $0x78] sm:$0xff]
        %v291 = vld [vmem:[%s238 + $0x80] sm:$0xff]
        %v292 = vld [vmem:[%s238 + $0x88] sm:$0xff]
        %v293 = vld [vmem:[%s238 + $0x90] sm:$0xff]
        %v294 = vld [vmem:[%s238 + $0x98] sm:$0xff]
        %v295 = vld [vmem:[%s238 + $0xa0] sm:$0xff]
        %v296 = vld [vmem:[%s238 + $0xa8] sm:$0xff]
        %v297 = vld [vmem:[%s238 + $0xb0] sm:$0xff]
        %v298 = vld [vmem:[%s238 + $0xb8] sm:$0xff]
        %v299 = vld [vmem:[%s238 + $0xc0] sm:$0xff]
        %v300 = vld [vmem:[%s238 + $0xc8] sm:$0xff]
        %v301 = vld [vmem:[%s238 + $0xd0] sm:$0xff]
        %v302 = vld [vmem:[%s238 + $0xd8] sm:$0xff]
        %v303 = vld [vmem:[%s238 + $0xe0] sm:$0xff]
        %v304 = vld [vmem:[%s238 + $0xe8] sm:$0xff]
        %v305 = vld [vmem:[%s238 + $0xf0] sm:$0xff]
        %v306 = vld [vmem:[%s238 + $0xf8] sm:$0xff]
        %v307 = vld [vmem:[#allocation5] sm:$0xff]
        %v308 = vld [vmem:[#allocation5 + $0x8] sm:$0xff]
        %v309 = vld [vmem:[#allocation5 + $0x10] sm:$0xff]
        %v310 = vld [vmem:[#allocation5 + $0x18] sm:$0xff]
        %v311 = vld [vmem:[#allocation5 + $0x20] sm:$0xff]
        %v312 = vld [vmem:[#allocation5 + $0x28] sm:$0xff]
        %v313 = vld [vmem:[#allocation5 + $0x30] sm:$0xff]
        %v314 = vld [vmem:[#allocation5 + $0x38] sm:$0xff]
        %v315 = vld [vmem:[#allocation5 + $0x40] sm:$0xff]
        %v316 = vld [vmem:[#allocation5 + $0x48] sm:$0xff]
        %v317 = vld [vmem:[#allocation5 + $0x50] sm:$0xff]
        %v318 = vld [vmem:[#allocation5 + $0x58] sm:$0xff]
        %v319 = vld [vmem:[#allocation5 + $0x60] sm:$0xff]
        %v320 = vld [vmem:[#allocation5 + $0x68] sm:$0xff]
        %v321 = vld [vmem:[#allocation5 + $0x70] sm:$0xff]
        %v322 = vld [vmem:[#allocation5 + $0x78] sm:$0xff]
        %v323 = vld [vmem:[#allocation5 + $0x80] sm:$0xff]
        %v324 = vld [vmem:[#allocation5 + $0x88] sm:$0xff]
        %v325 = vld [vmem:[#allocation5 + $0x90] sm:$0xff]
        %v326 = vld [vmem:[#allocation5 + $0x98] sm:$0xff]
        %v327 = vld [vmem:[#allocation5 + $0xa0] sm:$0xff]
        %v328 = vld [vmem:[#allocation5 + $0xa8] sm:$0xff]
        %v329 = vld [vmem:[#allocation5 + $0xb0] sm:$0xff]
        %v330 = vld [vmem:[#allocation5 + $0xb8] sm:$0xff]
        %v331 = vld [vmem:[#allocation5 + $0xc0] sm:$0xff]
        %v332 = vld [vmem:[#allocation5 + $0xc8] sm:$0xff]
        %v333 = vld [vmem:[#allocation5 + $0xd0] sm:$0xff]
        %v334 = vld [vmem:[#allocation5 + $0xd8] sm:$0xff]
        %v335 = vld [vmem:[#allocation5 + $0xe0] sm:$0xff]
        %v336 = vld [vmem:[#allocation5 + $0xe8] sm:$0xff]
        %v337 = vld [vmem:[#allocation5 + $0xf0] sm:$0xff]
        %v338 = vld [vmem:[#allocation5 + $0xf8] sm:$0xff]
        %v339 = vld [vmem:[%s2] sm:$0x1]
        %v341 = vlaneseq
        %v342 = vshrl.u32 %v341, 7
        %v343 = vsub.s32 0, %v342
        %v344 = vrot.slane %v339, %v343
        %346 = vmatprep.subr.mxu0 0.0
        %347 = vmatpush1.msra.mxu0 %v322
        %348 = vmatprep.subr.mxu0 0.0
        %349 = vmatpush1.msra.mxu0 %v321
        %350 = vmatprep.subr.mxu0 0.0
        %351 = vmatpush1.msra.mxu0 %v320
        %352 = vmatprep.subr.mxu0 0.0
        %353 = vmatpush1.msra.mxu0 %v319
        %354 = vmatprep.subr.mxu0 0.0
        %355 = vmatpush1.msra.mxu0 %v318
        %356 = vmatprep.subr.mxu0 0.0
        %357 = vmatpush1.msra.mxu0 %v317
        %358 = vmatprep.subr.mxu0 0.0
        %359 = vmatpush1.msra.mxu0 %v316
        %360 = vmatprep.subr.mxu0 0.0
        %361 = vmatpush1.msra.mxu0 %v315
        %362 = vmatprep.subr.mxu0 0.0
        %363 = vmatpush1.msra.mxu0 %v314
        %364 = vmatprep.subr.mxu0 0.0
        %365 = vmatpush1.msra.mxu0 %v313
        %366 = vmatprep.subr.mxu0 0.0
        %367 = vmatpush1.msra.mxu0 %v312
        %368 = vmatprep.subr.mxu0 0.0
        %369 = vmatpush1.msra.mxu0 %v311
        %370 = vmatprep.subr.mxu0 0.0
        %371 = vmatpush1.msra.mxu0 %v310
        %372 = vmatprep.subr.mxu0 0.0
        %373 = vmatpush1.msra.mxu0 %v309
        %374 = vmatprep.subr.mxu0 0.0
        %375 = vmatpush1.msra.mxu0 %v308
        %376 = vmatprep.subr.mxu0 0.0
        %377 = vmatpush1.msra.mxu0 %v307
        %378 = vmatprep.subr.mxu0 0.0
        %379 = vmatpush2.msra.mxu0 %v338
        %380 = vmatprep.subr.mxu0 0.0
        %381 = vmatpush2.msra.mxu0 %v337
        %382 = vmatprep.subr.mxu0 0.0
        %383 = vmatpush2.msra.mxu0 %v336
        %384 = vmatprep.subr.mxu0 0.0
        %385 = vmatpush2.msra.mxu0 %v335
        %386 = vmatprep.subr.mxu0 0.0
        %387 = vmatpush2.msra.mxu0 %v334
        %388 = vmatprep.subr.mxu0 0.0
        %389 = vmatpush2.msra.mxu0 %v333
        %390 = vmatprep.subr.mxu0 0.0
        %391 = vmatpush2.msra.mxu0 %v332
        %392 = vmatprep.subr.mxu0 0.0
        %393 = vmatpush2.msra.mxu0 %v331
        %394 = vmatprep.subr.mxu0 0.0
        %395 = vmatpush2.msra.mxu0 %v330
        %396 = vmatprep.subr.mxu0 0.0
        %397 = vmatpush2.msra.mxu0 %v329
        %398 = vmatprep.subr.mxu0 0.0
        %399 = vmatpush2.msra.mxu0 %v328
        %400 = vmatprep.subr.mxu0 0.0
        %401 = vmatpush2.msra.mxu0 %v327
        %402 = vmatprep.subr.mxu0 0.0
        %403 = vmatpush2.msra.mxu0 %v326
        %404 = vmatprep.subr.mxu0 0.0
        %405 = vmatpush2.msra.mxu0 %v325
        %406 = vmatprep.subr.mxu0 0.0
        %407 = vmatpush2.msra.mxu0 %v324
        %408 = vmatprep.subr.mxu0 0.0
        %409 = vmatpush2.msra.mxu0 %v323
        %410 = vmatprep.mubr.f32.mxu0 %v276
        %411 = vmatmul.mubr.f32.gmra.mxu0 %v275
        %v412 = vpop.f32.mrf.mxu0
        %v413 = vadd.f32 %v344, %v412
        %v414 = vpop.f32.mrf.mxu0
        %415 = vmatprep.mubr.f32.mxu0 %v278
        %416 = vmatmul.mubr.f32.gmra.mxu0 %v277
        %v417 = vpop.f32.mrf.mxu0
        %v418 = vadd.f32 %v344, %v417
        %v419 = vpop.f32.mrf.mxu0
        %420 = vmatprep.mubr.f32.mxu0 %v280
        %421 = vmatmul.mubr.f32.gmra.mxu0 %v279
        %v422 = vpop.f32.mrf.mxu0
        %v423 = vadd.f32 %v344, %v422
        %v424 = vpop.f32.mrf.mxu0
        %425 = vmatprep.mubr.f32.mxu0 %v282
        %426 = vmatmul.mubr.f32.gmra.mxu0 %v281
        %v427 = vpop.f32.mrf.mxu0
        %v428 = vadd.f32 %v344, %v427
        %v429 = vpop.f32.mrf.mxu0
        %430 = vmatprep.mubr.f32.mxu0 %v284
        %431 = vmatmul.mubr.f32.gmra.mxu0 %v283
        %v432 = vpop.f32.mrf.mxu0
        %v433 = vadd.f32 %v344, %v432
        %v434 = vpop.f32.mrf.mxu0
        %435 = vmatprep.mubr.f32.mxu0 %v286
        %436 = vmatmul.mubr.f32.gmra.mxu0 %v285
        %v437 = vpop.f32.mrf.mxu0
        %v438 = vadd.f32 %v344, %v437
        %v439 = vpop.f32.mrf.mxu0
        %440 = vmatprep.mubr.f32.mxu0 %v288
        %441 = vmatmul.mubr.f32.gmra.mxu0 %v287
        %v442 = vpop.f32.mrf.mxu0
        %v443 = vadd.f32 %v344, %v442
        %v444 = vpop.f32.mrf.mxu0
        %445 = vmatprep.mubr.f32.mxu0 %v290
        %446 = vmatmul.mubr.f32.gmra.mxu0 %v289
        %v447 = vpop.f32.mrf.mxu0
        %v448 = vadd.f32 %v344, %v447
        %v449 = vpop.f32.mrf.mxu0
        %450 = vmatprep.mubr.f32.mxu0 %v292
        %451 = vmatmul.mubr.f32.gmra.mxu0 %v291
        %v452 = vpop.f32.mrf.mxu0
        %v453 = vadd.f32 %v344, %v452
        %v454 = vpop.f32.mrf.mxu0
        %455 = vmatprep.mubr.f32.mxu0 %v294
        %456 = vmatmul.mubr.f32.gmra.mxu0 %v293
        %v457 = vpop.f32.mrf.mxu0
        %v458 = vadd.f32 %v344, %v457
        %v459 = vpop.f32.mrf.mxu0
        %460 = vmatprep.mubr.f32.mxu0 %v296
        %461 = vmatmul.mubr.f32.gmra.mxu0 %v295
        %v462 = vpop.f32.mrf.mxu0
        %v463 = vadd.f32 %v344, %v462
        %v464 = vpop.f32.mrf.mxu0
        %465 = vmatprep.mubr.f32.mxu0 %v298
        %466 = vmatmul.mubr.f32.gmra.mxu0 %v297
        %v467 = vpop.f32.mrf.mxu0
        %v468 = vadd.f32 %v344, %v467
        %v469 = vpop.f32.mrf.mxu0
        %470 = vmatprep.mubr.f32.mxu0 %v300
        %471 = vmatmul.mubr.f32.gmra.mxu0 %v299
        %v472 = vpop.f32.mrf.mxu0
        %v473 = vadd.f32 %v344, %v472
        %v474 = vpop.f32.mrf.mxu0
        %475 = vmatprep.mubr.f32.mxu0 %v302
        %476 = vmatmul.mubr.f32.gmra.mxu0 %v301
        %v477 = vpop.f32.mrf.mxu0
        %v478 = vadd.f32 %v344, %v477
        %v479 = vpop.f32.mrf.mxu0
        %480 = vmatprep.mubr.f32.mxu0 %v304
        %481 = vmatmul.mubr.f32.gmra.mxu0 %v303
        %v482 = vpop.f32.mrf.mxu0
        %v483 = vadd.f32 %v344, %v482
        %v484 = vpop.f32.mrf.mxu0
        %485 = vmatprep.mubr.f32.mxu0 %v306
        %486 = vmatmul.mubr.f32.gmra.mxu0 %v305
        %v487 = vpop.f32.mrf.mxu0
        %v488 = vadd.f32 %v344, %v487
        %v489 = vpop.f32.mrf.mxu0
        %490 = vdwg.mxu0
        %v491 = vmul.f32 %v413, 0.5
        %v492 = vmul.f32 %v418, 0.5
        %v493 = vmul.f32 %v423, 0.5
        %v494 = vmul.f32 %v428, 0.5
        %v495 = vmul.f32 %v433, 0.5
        %v496 = vmul.f32 %v438, 0.5
        %v497 = vmul.f32 %v443, 0.5
        %v498 = vmul.f32 %v448, 0.5
        %v499 = vmul.f32 %v453, 0.5
        %v500 = vmul.f32 %v458, 0.5
        %v501 = vmul.f32 %v463, 0.5
        %v502 = vmul.f32 %v468, 0.5
        %v503 = vmul.f32 %v473, 0.5
        %v504 = vmul.f32 %v478, 0.5
        %v505 = vmul.f32 %v483, 0.5
        %v506 = vmul.f32 %v488, 0.5
        %v507 = vtanh.pop %v491
        %v508 = vtanh.pop %v492
        %v509 = vtanh.pop %v493
        %v510 = vtanh.pop %v494
        %v511 = vtanh.pop %v495
        %v512 = vtanh.pop %v496
        %v513 = vtanh.pop %v497
        %v514 = vtanh.pop %v498
        %v515 = vtanh.pop %v499
        %v516 = vtanh.pop %v500
        %v517 = vtanh.pop %v501
        %v518 = vtanh.pop %v502
        %v519 = vtanh.pop %v503
        %v520 = vtanh.pop %v504
        %v521 = vtanh.pop %v505
        %v522 = vtanh.pop %v506
        %v523 = vmul.f32 %v507, 0.5
        %v524 = vmul.f32 %v508, 0.5
        %v525 = vmul.f32 %v509, 0.5
        %v526 = vmul.f32 %v510, 0.5
        %v527 = vmul.f32 %v511, 0.5
        %v528 = vmul.f32 %v512, 0.5
        %v529 = vmul.f32 %v513, 0.5
        %v530 = vmul.f32 %v514, 0.5
        %v531 = vmul.f32 %v515, 0.5
        %v532 = vmul.f32 %v516, 0.5
        %v533 = vmul.f32 %v517, 0.5
        %v534 = vmul.f32 %v518, 0.5
        %v535 = vmul.f32 %v519, 0.5
        %v536 = vmul.f32 %v520, 0.5
        %v537 = vmul.f32 %v521, 0.5
        %v538 = vmul.f32 %v522, 0.5
        %v539 = vadd.f32 %v523, 0.5
        %v540 = vadd.f32 %v524, 0.5
        %v541 = vadd.f32 %v525, 0.5
        %v542 = vadd.f32 %v526, 0.5
        %v543 = vadd.f32 %v527, 0.5
        %v544 = vadd.f32 %v528, 0.5
        %v545 = vadd.f32 %v529, 0.5
        %v546 = vadd.f32 %v530, 0.5
        %v547 = vadd.f32 %v531, 0.5
        %v548 = vadd.f32 %v532, 0.5
        %v549 = vadd.f32 %v533, 0.5
        %v550 = vadd.f32 %v534, 0.5
        %v551 = vadd.f32 %v535, 0.5
        %v552 = vadd.f32 %v536, 0.5
        %v553 = vadd.f32 %v537, 0.5
        %v554 = vadd.f32 %v538, 0.5
        %v555 = vld [vmem:[#allocation7] sm:$0xff]
        %v556 = vld [vmem:[#allocation7 + $0x8] sm:$0xff]
        %v557 = vld [vmem:[#allocation7 + $0x10] sm:$0xff]
        %v558 = vld [vmem:[#allocation7 + $0x18] sm:$0xff]
        %v559 = vld [vmem:[#allocation7 + $0x20] sm:$0xff]
        %v560 = vld [vmem:[#allocation7 + $0x28] sm:$0xff]
        %v561 = vld [vmem:[#allocation7 + $0x30] sm:$0xff]
        %v562 = vld [vmem:[#allocation7 + $0x38] sm:$0xff]
        %v563 = vld [vmem:[#allocation7 + $0x40] sm:$0xff]
        %v564 = vld [vmem:[#allocation7 + $0x48] sm:$0xff]
        %v565 = vld [vmem:[#allocation7 + $0x50] sm:$0xff]
        %v566 = vld [vmem:[#allocation7 + $0x58] sm:$0xff]
        %v567 = vld [vmem:[#allocation7 + $0x60] sm:$0xff]
        %v568 = vld [vmem:[#allocation7 + $0x68] sm:$0xff]
        %v569 = vld [vmem:[#allocation7 + $0x70] sm:$0xff]
        %v570 = vld [vmem:[#allocation7 + $0x78] sm:$0xff]
        %v571 = vld [vmem:[#allocation7 + $0x80] sm:$0xff]
        %v572 = vld [vmem:[#allocation7 + $0x88] sm:$0xff]
        %v573 = vld [vmem:[#allocation7 + $0x90] sm:$0xff]
        %v574 = vld [vmem:[#allocation7 + $0x98] sm:$0xff]
        %v575 = vld [vmem:[#allocation7 + $0xa0] sm:$0xff]
        %v576 = vld [vmem:[#allocation7 + $0xa8] sm:$0xff]
        %v577 = vld [vmem:[#allocation7 + $0xb0] sm:$0xff]
        %v578 = vld [vmem:[#allocation7 + $0xb8] sm:$0xff]
        %v579 = vld [vmem:[#allocation7 + $0xc0] sm:$0xff]
        %v580 = vld [vmem:[#allocation7 + $0xc8] sm:$0xff]
        %v581 = vld [vmem:[#allocation7 + $0xd0] sm:$0xff]
        %v582 = vld [vmem:[#allocation7 + $0xd8] sm:$0xff]
        %v583 = vld [vmem:[#allocation7 + $0xe0] sm:$0xff]
        %v584 = vld [vmem:[#allocation7 + $0xe8] sm:$0xff]
        %v585 = vld [vmem:[#allocation7 + $0xf0] sm:$0xff]
        %v586 = vld [vmem:[#allocation7 + $0xf8] sm:$0xff]
        %v587 = vld [vmem:[%s4] sm:$0x3]
        %v589 = vlaneseq
        %v590 = vshrl.u32 %v589, 7
        %v591 = vsub.s32 0, %v590
        %v592 = vrot.slane %v587, %v591
        %v593 = vlaneseq
        %v594 = vshrl.u32 %v593, 7
        %v595 = vsub.s32 1, %v594
        %v596 = vrot.slane %v587, %v595
        %599 = vmatprep.subr.mxu0 %v586
        %600 = vmatpush1.msra.mxu0 %v585
        %601 = vmatprep.subr.mxu0 %v584
        %602 = vmatpush1.msra.mxu0 %v583
        %603 = vmatprep.subr.mxu0 %v582
        %604 = vmatpush1.msra.mxu0 %v581
        %605 = vmatprep.subr.mxu0 %v580
        %606 = vmatpush1.msra.mxu0 %v579
        %607 = vmatprep.subr.mxu0 %v578
        %608 = vmatpush1.msra.mxu0 %v577
        %609 = vmatprep.subr.mxu0 %v576
        %610 = vmatpush1.msra.mxu0 %v575
        %611 = vmatprep.subr.mxu0 %v574
        %612 = vmatpush1.msra.mxu0 %v573
        %613 = vmatprep.subr.mxu0 %v572
        %614 = vmatpush1.msra.mxu0 %v571
        %615 = vmatprep.subr.mxu0 %v570
        %616 = vmatpush1.msra.mxu0 %v569
        %617 = vmatprep.subr.mxu0 %v568
        %618 = vmatpush1.msra.mxu0 %v567
        %619 = vmatprep.subr.mxu0 %v566
        %620 = vmatpush1.msra.mxu0 %v565
        %621 = vmatprep.subr.mxu0 %v564
        %622 = vmatpush1.msra.mxu0 %v563
        %623 = vmatprep.subr.mxu0 %v562
        %624 = vmatpush1.msra.mxu0 %v561
        %625 = vmatprep.subr.mxu0 %v560
        %626 = vmatpush1.msra.mxu0 %v559
        %627 = vmatprep.subr.mxu0 %v558
        %628 = vmatpush1.msra.mxu0 %v557
        %629 = vmatprep.subr.mxu0 %v556
        %630 = vmatpush1.msra.mxu0 %v555
        %631 = vmatprep.subr.mxu0 0.0
        %632 = vmatpush2.msra.mxu0 0.0
        %633 = vmatprep.subr.mxu0 0.0
        %634 = vmatpush2.msra.mxu0 0.0
        %635 = vmatprep.subr.mxu0 0.0
        %636 = vmatpush2.msra.mxu0 0.0
        %637 = vmatprep.subr.mxu0 0.0
        %638 = vmatpush2.msra.mxu0 0.0
        %639 = vmatprep.subr.mxu0 0.0
        %640 = vmatpush2.msra.mxu0 0.0
        %641 = vmatprep.subr.mxu0 0.0
        %642 = vmatpush2.msra.mxu0 0.0
        %643 = vmatprep.subr.mxu0 0.0
        %644 = vmatpush2.msra.mxu0 0.0
        %645 = vmatprep.subr.mxu0 0.0
        %646 = vmatpush2.msra.mxu0 0.0
        %647 = vmatprep.subr.mxu0 0.0
        %648 = vmatpush2.msra.mxu0 0.0
        %649 = vmatprep.subr.mxu0 0.0
        %650 = vmatpush2.msra.mxu0 0.0
        %651 = vmatprep.subr.mxu0 0.0
        %652 = vmatpush2.msra.mxu0 0.0
        %653 = vmatprep.subr.mxu0 0.0
        %654 = vmatpush2.msra.mxu0 0.0
        %655 = vmatprep.subr.mxu0 0.0
        %656 = vmatpush2.msra.mxu0 0.0
        %657 = vmatprep.subr.mxu0 0.0
        %658 = vmatpush2.msra.mxu0 0.0
        %659 = vmatprep.subr.mxu0 0.0
        %660 = vmatpush2.msra.mxu0 0.0
        %661 = vmatprep.subr.mxu0 0.0
        %662 = vmatpush2.msra.mxu0 0.0
        %663 = vmatprep.mubr.f32.mxu0 0.0
        %664 = vmatmul.mubr.f32.gmra.mxu0 %v539
        %v665 = vpop.f32.mrf.mxu0
        %v666 = vadd.f32 %v592, %v665
        %v667 = vpop.f32.mrf.mxu0
        %v668 = vadd.f32 %v596, %v667
        %669 = vmatprep.mubr.f32.mxu0 0.0
        %670 = vmatmul.mubr.f32.gmra.mxu0 %v540
        %v671 = vpop.f32.mrf.mxu0
        %v672 = vadd.f32 %v592, %v671
        %v673 = vpop.f32.mrf.mxu0
        %v674 = vadd.f32 %v596, %v673
        %675 = vmatprep.mubr.f32.mxu0 0.0
        %676 = vmatmul.mubr.f32.gmra.mxu0 %v541
        %v677 = vpop.f32.mrf.mxu0
        %v678 = vadd.f32 %v592, %v677
        %v679 = vpop.f32.mrf.mxu0
        %v680 = vadd.f32 %v596, %v679
        %681 = vmatprep.mubr.f32.mxu0 0.0
        %682 = vmatmul.mubr.f32.gmra.mxu0 %v542
        %v683 = vpop.f32.mrf.mxu0
        %v684 = vadd.f32 %v592, %v683
        %v685 = vpop.f32.mrf.mxu0
        %v686 = vadd.f32 %v596, %v685
        %687 = vmatprep.mubr.f32.mxu0 0.0
        %688 = vmatmul.mubr.f32.gmra.mxu0 %v543
        %v689 = vpop.f32.mrf.mxu0
        %v690 = vadd.f32 %v592, %v689
        %v691 = vpop.f32.mrf.mxu0
        %v692 = vadd.f32 %v596, %v691
        %693 = vmatprep.mubr.f32.mxu0 0.0
        %694 = vmatmul.mubr.f32.gmra.mxu0 %v544
        %v695 = vpop.f32.mrf.mxu0
        %v696 = vadd.f32 %v592, %v695
        %v697 = vpop.f32.mrf.mxu0
        %v698 = vadd.f32 %v596, %v697
        %699 = vmatprep.mubr.f32.mxu0 0.0
        %700 = vmatmul.mubr.f32.gmra.mxu0 %v545
        %v701 = vpop.f32.mrf.mxu0
        %v702 = vadd.f32 %v592, %v701
        %v703 = vpop.f32.mrf.mxu0
        %v704 = vadd.f32 %v596, %v703
        %705 = vmatprep.mubr.f32.mxu0 0.0
        %706 = vmatmul.mubr.f32.gmra.mxu0 %v546
        %v707 = vpop.f32.mrf.mxu0
        %v708 = vadd.f32 %v592, %v707
        %v709 = vpop.f32.mrf.mxu0
        %v710 = vadd.f32 %v596, %v709
        %711 = vmatprep.mubr.f32.mxu0 0.0
        %712 = vmatmul.mubr.f32.gmra.mxu0 %v547
        %v713 = vpop.f32.mrf.mxu0
        %v714 = vadd.f32 %v592, %v713
        %v715 = vpop.f32.mrf.mxu0
        %v716 = vadd.f32 %v596, %v715
        %717 = vmatprep.mubr.f32.mxu0 0.0
        %718 = vmatmul.mubr.f32.gmra.mxu0 %v548
        %v719 = vpop.f32.mrf.mxu0
        %v720 = vadd.f32 %v592, %v719
        %v721 = vpop.f32.mrf.mxu0
        %v722 = vadd.f32 %v596, %v721
        %723 = vmatprep.mubr.f32.mxu0 0.0
        %724 = vmatmul.mubr.f32.gmra.mxu0 %v549
        %v725 = vpop.f32.mrf.mxu0
        %v726 = vadd.f32 %v592, %v725
        %v727 = vpop.f32.mrf.mxu0
        %v728 = vadd.f32 %v596, %v727
        %729 = vmatprep.mubr.f32.mxu0 0.0
        %730 = vmatmul.mubr.f32.gmra.mxu0 %v550
        %v731 = vpop.f32.mrf.mxu0
        %v732 = vadd.f32 %v592, %v731
        %v733 = vpop.f32.mrf.mxu0
        %v734 = vadd.f32 %v596, %v733
        %735 = vmatprep.mubr.f32.mxu0 0.0
        %736 = vmatmul.mubr.f32.gmra.mxu0 %v551
        %v737 = vpop.f32.mrf.mxu0
        %v738 = vadd.f32 %v592, %v737
        %v739 = vpop.f32.mrf.mxu0
        %v740 = vadd.f32 %v596, %v739
        %741 = vmatprep.mubr.f32.mxu0 0.0
        %742 = vmatmul.mubr.f32.gmra.mxu0 %v552
        %v743 = vpop.f32.mrf.mxu0
        %v744 = vadd.f32 %v592, %v743
        %v745 = vpop.f32.mrf.mxu0
        %v746 = vadd.f32 %v596, %v745
        %747 = vmatprep.mubr.f32.mxu0 0.0
        %748 = vmatmul.mubr.f32.gmra.mxu0 %v553
        %v749 = vpop.f32.mrf.mxu0
        %v750 = vadd.f32 %v592, %v749
        %v751 = vpop.f32.mrf.mxu0
        %v752 = vadd.f32 %v596, %v751
        %753 = vmatprep.mubr.f32.mxu0 0.0
        %754 = vmatmul.mubr.f32.gmra.mxu0 %v554
        %v755 = vpop.f32.mrf.mxu0
        %v756 = vadd.f32 %v592, %v755
        %v757 = vpop.f32.mrf.mxu0
        %v758 = vadd.f32 %v596, %v757
        %759 = vdwg.mxu0
        %v760 = vmul.f32 %v666, 0.5
        %v761 = vmul.f32 %v668, 0.5
        %v762 = vmul.f32 %v672, 0.5
        %v763 = vmul.f32 %v674, 0.5
        %v764 = vmul.f32 %v678, 0.5
        %v765 = vmul.f32 %v680, 0.5
        %v766 = vmul.f32 %v684, 0.5
        %v767 = vmul.f32 %v686, 0.5
        %v768 = vmul.f32 %v690, 0.5
        %v769 = vmul.f32 %v692, 0.5
        %v770 = vmul.f32 %v696, 0.5
        %v771 = vmul.f32 %v698, 0.5
        %v772 = vmul.f32 %v702, 0.5
        %v773 = vmul.f32 %v704, 0.5
        %v774 = vmul.f32 %v708, 0.5
        %v775 = vmul.f32 %v710, 0.5
        %v776 = vmul.f32 %v714, 0.5
        %v777 = vmul.f32 %v716, 0.5
        %v778 = vmul.f32 %v720, 0.5
        %v779 = vmul.f32 %v722, 0.5
        %v780 = vmul.f32 %v726, 0.5
        %v781 = vmul.f32 %v728, 0.5
        %v782 = vmul.f32 %v732, 0.5
        %v783 = vmul.f32 %v734, 0.5
        %v784 = vmul.f32 %v738, 0.5
        %v785 = vmul.f32 %v740, 0.5
        %v786 = vmul.f32 %v744, 0.5
        %v787 = vmul.f32 %v746, 0.5
        %v788 = vmul.f32 %v750, 0.5
        %v789 = vmul.f32 %v752, 0.5
        %v790 = vmul.f32 %v756, 0.5
        %v791 = vmul.f32 %v758, 0.5
        %v792 = vtanh.pop %v760
        %v793 = vtanh.pop %v761
        %v794 = vtanh.pop %v762
        %v795 = vtanh.pop %v763
        %v796 = vtanh.pop %v764
        %v797 = vtanh.pop %v765
        %v798 = vtanh.pop %v766
        %v799 = vtanh.pop %v767
        %v800 = vtanh.pop %v768
        %v801 = vtanh.pop %v769
        %v802 = vtanh.pop %v770
        %v803 = vtanh.pop %v771
        %v804 = vtanh.pop %v772
        %v805 = vtanh.pop %v773
        %v806 = vtanh.pop %v774
        %v807 = vtanh.pop %v775
        %v808 = vtanh.pop %v776
        %v809 = vtanh.pop %v777
        %v810 = vtanh.pop %v778
        %v811 = vtanh.pop %v779
        %v812 = vtanh.pop %v780
        %v813 = vtanh.pop %v781
        %v814 = vtanh.pop %v782
        %v815 = vtanh.pop %v783
        %v816 = vtanh.pop %v784
        %v817 = vtanh.pop %v785
        %v818 = vtanh.pop %v786
        %v819 = vtanh.pop %v787
        %v820 = vtanh.pop %v788
        %v821 = vtanh.pop %v789
        %v822 = vtanh.pop %v790
        %v823 = vtanh.pop %v791
        %v824 = vmul.f32 %v792, 0.5
        %v825 = vmul.f32 %v793, 0.5
        %v826 = vmul.f32 %v794, 0.5
        %v827 = vmul.f32 %v795, 0.5
        %v828 = vmul.f32 %v796, 0.5
        %v829 = vmul.f32 %v797, 0.5
        %v830 = vmul.f32 %v798, 0.5
        %v831 = vmul.f32 %v799, 0.5
        %v832 = vmul.f32 %v800, 0.5
        %v833 = vmul.f32 %v801, 0.5
        %v834 = vmul.f32 %v802, 0.5
        %v835 = vmul.f32 %v803, 0.5
        %v836 = vmul.f32 %v804, 0.5
        %v837 = vmul.f32 %v805, 0.5
        %v838 = vmul.f32 %v806, 0.5
        %v839 = vmul.f32 %v807, 0.5
        %v840 = vmul.f32 %v808, 0.5
        %v841 = vmul.f32 %v809, 0.5
        %v842 = vmul.f32 %v810, 0.5
        %v843 = vmul.f32 %v811, 0.5
        %v844 = vmul.f32 %v812, 0.5
        %v845 = vmul.f32 %v813, 0.5
        %v846 = vmul.f32 %v814, 0.5
        %v847 = vmul.f32 %v815, 0.5
        %v848 = vmul.f32 %v816, 0.5
        %v849 = vmul.f32 %v817, 0.5
        %v850 = vmul.f32 %v818, 0.5
        %v851 = vmul.f32 %v819, 0.5
        %v852 = vmul.f32 %v820, 0.5
        %v853 = vmul.f32 %v821, 0.5
        %v854 = vmul.f32 %v822, 0.5
        %v855 = vmul.f32 %v823, 0.5
        %v856 = vadd.f32 %v824, 0.5
        %v857 = vadd.f32 %v825, 0.5
        %v858 = vadd.f32 %v826, 0.5
        %v859 = vadd.f32 %v827, 0.5
        %v860 = vadd.f32 %v828, 0.5
        %v861 = vadd.f32 %v829, 0.5
        %v862 = vadd.f32 %v830, 0.5
        %v863 = vadd.f32 %v831, 0.5
        %v864 = vadd.f32 %v832, 0.5
        %v865 = vadd.f32 %v833, 0.5
        %v866 = vadd.f32 %v834, 0.5
        %v867 = vadd.f32 %v835, 0.5
        %v868 = vadd.f32 %v836, 0.5
        %v869 = vadd.f32 %v837, 0.5
        %v870 = vadd.f32 %v838, 0.5
        %v871 = vadd.f32 %v839, 0.5
        %v872 = vadd.f32 %v840, 0.5
        %v873 = vadd.f32 %v841, 0.5
        %v874 = vadd.f32 %v842, 0.5
        %v875 = vadd.f32 %v843, 0.5
        %v876 = vadd.f32 %v844, 0.5
        %v877 = vadd.f32 %v845, 0.5
        %v878 = vadd.f32 %v846, 0.5
        %v879 = vadd.f32 %v847, 0.5
        %v880 = vadd.f32 %v848, 0.5
        %v881 = vadd.f32 %v849, 0.5
        %v882 = vadd.f32 %v850, 0.5
        %v883 = vadd.f32 %v851, 0.5
        %v884 = vadd.f32 %v852, 0.5
        %v885 = vadd.f32 %v853, 0.5
        %v886 = vadd.f32 %v854, 0.5
        %v887 = vadd.f32 %v855, 0.5
        %888 = vst [vmem:[%s272] sm:$0xff] %v856
        %889 = vst [vmem:[%s272 + $0x8] sm:$0xff] %v857
        %890 = vst [vmem:[%s272 + $0x10] sm:$0xff] %v858
        %891 = vst [vmem:[%s272 + $0x18] sm:$0xff] %v859
        %892 = vst [vmem:[%s272 + $0x20] sm:$0xff] %v860
        %893 = vst [vmem:[%s272 + $0x28] sm:$0xff] %v861
        %894 = vst [vmem:[%s272 + $0x30] sm:$0xff] %v862
        %895 = vst [vmem:[%s272 + $0x38] sm:$0xff] %v863
        %896 = vst [vmem:[%s272 + $0x40] sm:$0xff] %v864
        %897 = vst [vmem:[%s272 + $0x48] sm:$0xff] %v865
        %898 = vst [vmem:[%s272 + $0x50] sm:$0xff] %v866
        %899 = vst [vmem:[%s272 + $0x58] sm:$0xff] %v867
        %900 = vst [vmem:[%s272 + $0x60] sm:$0xff] %v868
        %901 = vst [vmem:[%s272 + $0x68] sm:$0xff] %v869
        %902 = vst [vmem:[%s272 + $0x70] sm:$0xff] %v870
        %903 = vst [vmem:[%s272 + $0x78] sm:$0xff] %v871
        %904 = vst [vmem:[%s272 + $0x80] sm:$0xff] %v872
        %905 = vst [vmem:[%s272 + $0x88] sm:$0xff] %v873
        %906 = vst [vmem:[%s272 + $0x90] sm:$0xff] %v874
        %907 = vst [vmem:[%s272 + $0x98] sm:$0xff] %v875
        %908 = vst [vmem:[%s272 + $0xa0] sm:$0xff] %v876
        %909 = vst [vmem:[%s272 + $0xa8] sm:$0xff] %v877
        %910 = vst [vmem:[%s272 + $0xb0] sm:$0xff] %v878
        %911 = vst [vmem:[%s272 + $0xb8] sm:$0xff] %v879
        %912 = vst [vmem:[%s272 + $0xc0] sm:$0xff] %v880
        %913 = vst [vmem:[%s272 + $0xc8] sm:$0xff] %v881
        %914 = vst [vmem:[%s272 + $0xd0] sm:$0xff] %v882
        %915 = vst [vmem:[%s272 + $0xd8] sm:$0xff] %v883
        %916 = vst [vmem:[%s272 + $0xe0] sm:$0xff] %v884
        %917 = vst [vmem:[%s272 + $0xe8] sm:$0xff] %v885
        %918 = vst [vmem:[%s272 + $0xf0] sm:$0xff] %v886
        %919 = vst [vmem:[%s272 + $0xf8] sm:$0xff] %v887
        %s920 = sand.u32 %s141, 1
        %s921 = scalar_lea.sflag [#allocation4], %s920
        %s922 = sand.u32 %s141, 1
        %s923 = smul.addr %s922, 256
        %s924 = scalar_lea.vmem [#allocation8], %s923
        // Predicated region
        $region53: #{autoencoder_forward.1} parent=39 // pred_check
          %p925 = pneg %p151
        $region54: #{autoencoder_forward.1} parent=39 // pred_check_branch
          %927 = sbr.rel (%p925) target = $region56
        $region55: #{autoencoder_forward.1} parent=39 // pred_region
          %s928 = smul.u32 16, %s23
          %s930 = ssub.s32 4096, 4096
          %931 = vsyncadd %s921, %s930
          %s932 = smul.addr %s928, 2
          %s933 = smul.addr %s932, 128
          %s934 = scalar_lea.hbm %s5, %s933
          %s935 = sshll.u32 %s924, 4
          %s936 = int_to_ptr.vmem [resolvable:$true] %s935
          %941 = dma.vmem_to_hbm [thread:$0]  %s936, 4096, %s934, %s921, 256, 256, 16
        $region56: #{autoencoder_forward.1} parent=39 // pred_fallthru
          _
      $region40: #{autoencoder_forward.1} parent=5 // pred_fallthru
        _
      %p942 = scmp.le.s32.totalorder 2, %s18
      // Predicated region
      $region57: #{autoencoder_forward.1} parent=5 // pred_check
        %p943 = pneg %p942
      $region58: #{autoencoder_forward.1} parent=5 // pred_check_branch
        %945 = sbr.rel (%p943) target = $region60
      $region59: #{autoencoder_forward.1} parent=5 // pred_region
        %s946 = ssub.s32 %s18, 2
        // Predicated region
        $region61: #{autoencoder_forward.1} parent=59 // pred_check
          %p947 = pneg %p157
        $region62: #{autoencoder_forward.1} parent=59 // pred_check_branch
          %949 = sbr.rel (%p947) target = $region64
        $region63: #{autoencoder_forward.1} parent=59 // pred_region
          %s950 = sand.u32 %s142, 1
          %s951 = scalar_lea.sflag [#allocation4], %s950
          %s952 = sand.u32 %s142, 1
          %s953 = smul.addr %s952, 256
          %s954 = scalar_lea.vmem [#allocation8], %s953
          %955 = dma.done %s951, 4096
        $region64: #{autoencoder_forward.1} parent=59 // pred_fallthru
          _
      $region60: #{autoencoder_forward.1} parent=5 // pred_fallthru
        _
    $region6: #{autoencoder_forward.1} parent=1 // loop_footer
      %s22 = sadd.s32 1, %s18
    $region7: #{autoencoder_forward.1} parent=1 // loop_footer_branch
      %17 = sbr.rel target = $region3
    $region8: #{autoencoder_forward.1} parent=1 // loop_exit
      _
    %956 = vsyncpa [#allocation3], 1
    %s957 = scalar_lea.sflag [#allocation3], 1
    %958 = vsyncpa %s957, 1
    %959 = vsyncpa [#allocation6], 1
    %960 = vsyncpa [#allocation4], 1
    %s961 = scalar_lea.sflag [#allocation4], 1
    %962 = vsyncpa %s961, 1

</llo_original>
